<compile_context>
chip_gen: v7x
topology: tpu7x:2x2x1
jax: 0.10.0
libtpu: 0.0.40
codegen_flags: <defaults>
</compile_context>

<pallas_src>
import jax
import jax.numpy as jnp
from jax import lax
from jax.experimental import pallas as pl
from jax.experimental.pallas import tpu as pltpu

BN_EPS = 1e-5
AGG_EPS = 1e-6


def _round_up(x, m):
    return (x + m - 1) // m * m


def _pad2(x, rows, cols):
    r, c = x.shape
    return jnp.pad(x, ((0, rows - r), (0, cols - c)))


# --------------------------------------------------------------------------
# Pre-pass: fused node linear  node_lin = h @ [WD|WB|WE|WA] + b   (row-tiled)
# --------------------------------------------------------------------------
def _node_linear_kernel(h_ref, w_ref, b_ref, out_ref):
    out_ref[...] = (jnp.dot(h_ref[...], w_ref[...],
                            preferred_element_type=jnp.float32) + b_ref[...])


# --------------------------------------------------------------------------
# Pass 1: per-edge-tile gather / edge update / scatter-accumulate / finalize
# --------------------------------------------------------------------------
def _make_edge_pass_kernel(n_true, e_true, TE, Np, Dp, residual):
    def kernel(*refs):
        src_sm, dst_sm, dst_vm_ref, e_ref, node_lin_ref = refs[:5]
        pos = 5
        h_ref = None
        if residual:
            h_ref = refs[pos]
            pos += 1
        (wc_ref, bc_ref, gn_ref, btn_ref, ge_ref, bte_ref, cshift_ref,
         e_raw_ref, h_out_ref, escale_ref, eshift_ref,
         g_ref, acc_ref, esum_ref, esqs_ref) = refs[pos:]

        t = pl.program_id(0)
        n_tiles = pl.num_programs(0)

        @pl.when(t == 0)
        def _init():
            acc_ref[...] = jnp.zeros_like(acc_ref)
            esum_ref[...] = jnp.zeros_like(esum_ref)
            esqs_ref[...] = jnp.zeros_like(esqs_ref)

        base = t * TE

        # ---- exact dynamic row gather from resident node_lin: O(TE*D) ----
        # node_lin layout: [Dh | Bh | Eh | Ah], each block Dp lanes wide.
        def gather_row(i, carry):
            sid = src_sm[base + i]
            did = dst_sm[base + i]
            g_ref[pl.ds(i, 1), 0:2 * Dp] = node_lin_ref[pl.ds(sid, 1), 0:2 * Dp]
            g_ref[pl.ds(i, 1), 2 * Dp:3 * Dp] = (
                node_lin_ref[pl.ds(did, 1), 2 * Dp:3 * Dp])
            return carry

        lax.fori_loop(0, TE, gather_row, 0, unroll=8)

        g = g_ref[...]                       # (TE, 3*Dp) = [Dh_src|Bh_src|Eh_dst]
        dh_src = g[:, 0:Dp]
        bh_src = g[:, Dp:2 * Dp]
        eh_dst = g[:, 2 * Dp:3 * Dp]

        ce = (jnp.dot(e_ref[...], wc_ref[...],
                      preferred_element_type=jnp.float32) + bc_ref[...])

        e_new = dh_src + eh_dst + ce          # (TE, Dp)
        sigma = jax.nn.sigmoid(e_new)
        e_raw_ref[...] = e_new

        # ---- scatter-add via PRE-TRANSPOSED one-hot: (Np, TE) @ (TE, 2*Dp) ----
        dst_row = dst_vm_ref[0]                                   # (1, TE) int32
        node_iota = lax.broadcasted_iota(jnp.int32, (Np, TE), 0)  # sublane = node id
        dst_oh_t = (dst_row == node_iota).astype(jnp.float32)     # pad rows (dst=-1) -> 0
        scat = jnp.concatenate([sigma * bh_src, sigma], axis=1)   # (TE, 2*Dp)
        acc_ref[...] += jnp.dot(dst_oh_t, scat,
                                preferred_element_type=jnp.float32)

        # ---- edge-BN statistics (shifted, padded rows masked) ----
        row_ids = base + lax.broadcasted_iota(jnp.int32, (TE, 1), 0)
        valid = (row_ids < e_true).astype(jnp.float32)            # (TE, 1)
        e_c = (e_new - cshift_ref[...]) * valid
        esum_ref[...] += jnp.sum(e_c, axis=0, keepdims=True)
        esqs_ref[...] += jnp.sum(e_c * e_c, axis=0, keepdims=True)

        # ---- last tile: node finalize + edge BN affine coefficients ----
        @pl.when(t == n_tiles - 1)
        def _finalize():
            acc = acc_ref[...]
            h_new = (node_lin_ref[:, 3 * Dp:4 * Dp]
                     + acc[:, 0:Dp] / (acc[:, Dp:2 * Dp] + AGG_EPS))

            nvalid = (lax.broadcasted_iota(jnp.int32, (Np, 1), 0)
                      < n_true).astype(jnp.float32)
            inv_n = 1.0 / float(n_true)
            hm = jnp.sum(h_new * nvalid, axis=0, keepdims=True) * inv_n
            hc = (h_new - hm) * nvalid
            hv = jnp.sum(hc * hc, axis=0, keepdims=True) * inv_n
            h_act = jnp.maximum(
                (h_new - hm) * lax.rsqrt(hv + BN_EPS) * gn_ref[...] + btn_ref[...],
                0.0)
            if residual:
                h_out_ref[...] = h_ref[...] + h_act
            else:
                h_out_ref[...] = h_act

            inv_e = 1.0 / float(e_true)
            mean_c = esum_ref[...] * inv_e
            var = jnp.maximum(esqs_ref[...] * inv_e - mean_c * mean_c, 0.0)
            scale = lax.rsqrt(var + BN_EPS) * ge_ref[...]
            escale_ref[...] = scale
            eshift_ref[...] = bte_ref[...] - (mean_c + cshift_ref[...]) * scale

    return kernel


# --------------------------------------------------------------------------
# Pass 2: edge BN affine + ReLU (+ residual) — pure bandwidth, large blocks
# --------------------------------------------------------------------------
def _make_edge_finalize_kernel(residual):
    if residual:
        def kernel(e_raw_ref, e_in_ref, scale_ref, shift_ref, e_out_ref):
            e_out_ref[...] = e_in_ref[...] + jnp.maximum(
                e_raw_ref[...] * scale_ref[...] + shift_ref[...], 0.0)
    else:
        def kernel(e_raw_ref, scale_ref, shift_ref, e_out_ref):
            e_out_ref[...] = jnp.maximum(
                e_raw_ref[...] * scale_ref[...] + shift_ref[...], 0.0)
    return kernel


# --------------------------------------------------------------------------
# Wrapper
# --------------------------------------------------------------------------
def gatedgcn_forward(src, dst, feat, edge_feat, params, *, edge_tile=None):
    N, Din = feat.shape
    E, De = edge_feat.shape
    Dout = params["WA"].shape[1]
    residual = (Din == Dout) and (De == Dout)

    Dp = _round_up(Dout, 128)
    Hp = _round_up(Din, 128)
    Ep = _round_up(De, 128)
    Np = _round_up(N, 8)

    # Per-generation VMEM budget / default edge tile.
    try:
        vmem_cap = int(pltpu.get_tpu_info().vmem_capacity_bytes)
    except Exception:
        vmem_cap = 64 * 1024 * 1024          # conservative (v7x)
    if edge_tile is None:
        edge_tile = 1024 if vmem_cap >= 96 * 1024 * 1024 else 512

    TE = max(128, _round_up(min(edge_tile, E), 128))
    E_pad = _round_up(E, TE)
    n_tiles = E_pad // TE
    pad_e = E_pad - E

    # ---- parameter packing (lane-padded to Dp) ----
    w_node = jnp.concatenate(
        [_pad2(params[k], Hp, Dp) for k in ("WD", "WB", "WE", "WA")], axis=1)
    b_node = jnp.concatenate(
        [_pad2(params[k].reshape(1, -1), 1, Dp)
         for k in ("bD", "bB", "bE", "bA")], axis=1)
    wc_pad = _pad2(params["WC"], Ep, Dp)
    bc_pad = _pad2(params["bC"].reshape(1, -1), 1, Dp)
    gn = _pad2(params["gamma_n"].reshape(1, -1), 1, Dp)
    btn = _pad2(params["beta_n"].reshape(1, -1), 1, Dp)
    ge = _pad2(params["gamma_e"].reshape(1, -1), 1, Dp)
    bte = _pad2(params["beta_e"].reshape(1, -1), 1, Dp)
    cshift = _pad2((params["bD"] + params["bE"] + params["bC"]).reshape(1, -1),
                   1, Dp)                    # stability shift for edge-BN stats

    h_pad = _pad2(feat.astype(jnp.float32), Np, Hp)
    e_pad = _pad2(edge_feat.astype(jnp.float32), E_pad, Ep)

    # src/dst: 0-padded in SMEM (safe gather index), -1-padded in the VMEM copy
    # used for the scatter one-hot (padded rows never match -> no mask needed).
    src_sm = jnp.pad(src.astype(jnp.int32), (0, pad_e))
    dst_sm = jnp.pad(dst.astype(jnp.int32), (0, pad_e))
    dst_vm = jnp.pad(dst.astype(jnp.int32), (0, pad_e),
                     constant_values=-1).reshape(n_tiles, 1, TE)

    # ---- pre-pass: fused node linear (resident input to pass 1) ----
    TN = min(Np, 512)
    node_lin = pl.pallas_call(
        _node_linear_kernel,
        out_shape=jax.ShapeDtypeStruct((Np, 4 * Dp), jnp.float32),
        grid=(pl.cdiv(Np, TN),),
        in_specs=[pl.BlockSpec((TN, Hp), lambda i: (i, 0)),
                  pl.BlockSpec((Hp, 4 * Dp), lambda i: (0, 0)),
                  pl.BlockSpec((1, 4 * Dp), lambda i: (0, 0))],
        out_specs=pl.BlockSpec((TN, 4 * Dp), lambda i: (i, 0)),
        compiler_params=pltpu.CompilerParams(
            dimension_semantics=("parallel",)),
    )(h_pad, w_node, b_node)

    # ---- VMEM sizing for pass 1 ----
    f32 = 4
    resident = (Np * 4 * Dp + Np * 2 * Dp + Np * Dp + Ep * Dp + 10 * Dp
                + (Np * Hp if residual else 0)) * f32
    scratch = (TE * 3 * Dp + 2 * Dp) * f32
    streamed = 2 * (TE * Ep + TE + TE * Dp) * f32      # double-buffered tiles
    vmem_limit = int(min(max(int((resident + scratch + streamed) * 1.25),
                             32 * 1024 * 1024),
                         int(vmem_cap * 0.9)))

    # ---- pass 1 ----
    in_specs = [
        pl.BlockSpec((1, 1, TE), lambda t, s, d: (t, 0, 0)),      # dst ids (lanes)
        pl.BlockSpec((TE, Ep), lambda t, s, d: (t, 0)),           # edge feats tile
        pl.BlockSpec((Np, 4 * Dp), lambda t, s, d: (0, 0)),       # node_lin resident
    ]
    operands = [dst_vm, e_pad, node_lin]
    if residual:
        in_specs.append(pl.BlockSpec((Np, Hp), lambda t, s, d: (0, 0)))
        operands.append(h_pad)
    in_specs += [
        pl.BlockSpec((Ep, Dp), lambda t, s, d: (0, 0)),           # WC
        pl.BlockSpec((1, Dp), lambda t, s, d: (0, 0)),            # bC
        pl.BlockSpec((1, Dp), lambda t, s, d: (0, 0)),            # gamma_n
        pl.BlockSpec((1, Dp), lambda t, s, d: (0, 0)),            # beta_n
        pl.BlockSpec((1, Dp), lambda t, s, d: (0, 0)),            # gamma_e
        pl.BlockSpec((1, Dp), lambda t, s, d: (0, 0)),            # beta_e
        pl.BlockSpec((1, Dp), lambda t, s, d: (0, 0)),            # bD+bE+bC shift
    ]
    operands += [wc_pad, bc_pad, gn, btn, ge, bte, cshift]

    e_raw, h_out, e_scale, e_shift = pl.pallas_call(
        _make_edge_pass_kernel(N, E, TE, Np, Dp, residual),
        out_shape=(
            jax.ShapeDtypeStruct((E_pad, Dp), jnp.float32),   # raw e_ij
            jax.ShapeDtypeStruct((Np, Dp), jnp.float32),      # final node feats
            jax.ShapeDtypeStruct((1, Dp), jnp.float32),       # edge BN scale
            jax.ShapeDtypeStruct((1, Dp), jnp.float32),       # edge BN shift
        ),
        grid_spec=pltpu.PrefetchScalarGridSpec(
            num_scalar_prefetch=2,
            grid=(n_tiles,),
            in_specs=in_specs,
            out_specs=(
                pl.BlockSpec((TE, Dp), lambda t, s, d: (t, 0)),
                pl.BlockSpec((Np, Dp), lambda t, s, d: (0, 0)),
                pl.BlockSpec((1, Dp), lambda t, s, d: (0, 0)),
                pl.BlockSpec((1, Dp), lambda t, s, d: (0, 0)),
            ),
            scratch_shapes=[
                pltpu.VMEM((TE, 3 * Dp), jnp.float32),   # gathered rows
                pltpu.VMEM((Np, 2 * Dp), jnp.float32),   # [sum_sigma_h|sum_sigma]
                pltpu.VMEM((1, Dp), jnp.float32),        # sum(e - c)
                pltpu.VMEM((1, Dp), jnp.float32),        # sum((e - c)^2)
            ],
        ),
        compiler_params=pltpu.CompilerParams(
            dimension_semantics=("arbitrary",),
            vmem_limit_bytes=vmem_limit),
    )(src_sm, dst_sm, *operands)

    # ---- pass 2: large lane-dense blocks; alias e_raw buffer into the output ----
    g = 1
    for cand in range(n_tiles, 0, -1):
        if n_tiles % cand == 0 and cand * TE <= 4096:
            g = cand
            break
    TE2 = g * TE

    p2_specs = [pl.BlockSpec((TE2, Dp), lambda t: (t, 0))]
    p2_ops = [e_raw]
    if residual:                              # residual -> Ep == Dp
        p2_specs.append(pl.BlockSpec((TE2, Dp), lambda t: (t, 0)))
        p2_ops.append(e_pad)
    p2_specs += [pl.BlockSpec((1, Dp), lambda t: (0, 0)),
                 pl.BlockSpec((1, Dp), lambda t: (0, 0))]
    p2_ops += [e_scale, e_shift]

    e_out = pl.pallas_call(
        _make_edge_finalize_kernel(residual),
        out_shape=jax.ShapeDtypeStruct((E_pad, Dp), jnp.float32),
        grid=(E_pad // TE2,),
        in_specs=p2_specs,
        out_specs=pl.BlockSpec((TE2, Dp), lambda t: (t, 0)),
        input_output_aliases={0: 0},
        compiler_params=pltpu.CompilerParams(
            dimension_semantics=("parallel",)),
    )(*p2_ops)

    return h_out[:N, :Dout], e_out[:E, :Dout]


# --------------------------------------------------------------------------
# Pure-JAX reference mirroring the PyTorch module
# --------------------------------------------------------------------------
def reference_forward(src, dst, feat, edge_feat, params):
    Ah = feat @ params["WA"] + params["bA"]
    Bh = feat @ params["WB"] + params["bB"]
    Dh = feat @ params["WD"] + params["bD"]
    Eh = feat @ params["WE"] + params["bE"]
    Ce = edge_feat @ params["WC"] + params["bC"]
    Dout = Ah.shape[1]
    residual = (feat.shape[1] == Dout) and (edge_feat.shape[1] == Dout)

    e_new = Dh[src] + Eh[dst] + Ce
    sigma = jax.nn.sigmoid(e_new)
    N = feat.shape[0]
    sum_sigma_h = jnp.zeros((N, Dout)).at[dst].add(sigma * Bh[src])
    sum_sigma = jnp.zeros((N, Dout)).at[dst].add(sigma)
    h_new = Ah + sum_sigma_h / (sum_sigma + AGG_EPS)

    def bn(x, g, b):
        m = jnp.mean(x, axis=0, keepdims=True)
        v = jnp.mean((x - m) ** 2, axis=0, keepdims=True)
        return (x - m) / jnp.sqrt(v + BN_EPS) * g + b

    h = jnp.maximum(bn(h_new, params["gamma_n"], params["beta_n"]), 0.0)
    e = jnp.maximum(bn(e_new, params["gamma_e"], params["beta_e"]), 0.0)
    if residual:
        h = feat + h
        e = edge_feat + e
    return h, e


if __name__ == "__main__":
    num_nodes, num_edges = 12, 300
    input_feats = edge_feats = output_feats = 16   # equal dims -> residual=True

    key = jax.random.PRNGKey(0)
    ks = jax.random.split(key, 16)

    def linear_init(kw, kb, fan_in, fan_out):
        bound = 1.0 / jnp.sqrt(fan_in)
        W = jax.random.uniform(kw, (fan_in, fan_out), jnp.float32, -bound, bound)
        b = jax.random.uniform(kb, (1, fan_out), jnp.float32, -bound, bound)
        return W, b

    WA, bA = linear_init(ks[0], ks[1], input_feats, output_feats)
    WB, bB = linear_init(ks[2], ks[3], input_feats, output_feats)
    WD, bD = linear_init(ks[4], ks[5], input_feats, output_feats)
    WE, bE = linear_init(ks[6], ks[7], input_feats, output_feats)
    WC, bC = linear_init(ks[8], ks[9], edge_feats, output_feats)

    params = dict(
        WA=WA, bA=bA, WB=WB, bB=bB, WD=WD, bD=bD, WE=WE, bE=bE, WC=WC, bC=bC,
        gamma_n=jnp.ones((1, output_feats), jnp.float32),
        beta_n=jnp.zeros((1, output_feats), jnp.float32),
        gamma_e=jnp.ones((1, output_feats), jnp.float32),
        beta_e=jnp.zeros((1, output_feats), jnp.float32),
    )

    feat = jax.random.normal(ks[10], (num_nodes, input_feats), jnp.float32)
    edge_feat = jax.random.normal(ks[11], (num_edges, edge_feats), jnp.float32)
    src = jax.random.randint(ks[12], (num_edges,), 0, num_nodes, jnp.int32)
    dst = jax.random.randint(ks[13], (num_edges,), 0, num_nodes, jnp.int32)

    # edge_tile=128 -> TE=128, 3 edge tiles: exercises tiled accumulation,
    # -1 padded scatter rows and the pass-2 block regrouping.
    h_out, e_out = gatedgcn_forward(src, dst, feat, edge_feat, params,
                                    edge_tile=128)
    jax.block_until_ready((h_out, e_out))

    h_exp, e_exp = reference_forward(src, dst, feat, edge_feat, params)
    assert jnp.allclose(h_out, h_exp, atol=1e-4, rtol=1e-4), "node features mismatch"
    assert jnp.allclose(e_out, e_exp, atol=1e-4, rtol=1e-4), "edge features mismatch"

    print("KERNEL_OK")
</pallas_src>

<mosaic_0001>
module attributes {stable_mosaic.version = 11 : i64} {
  func.func @_node_linear_kernel(%arg0: i32, %arg1: memref<16x128xf32, #tpu.memory_space<vmem>>, %arg2: memref<128x512xf32, #tpu.memory_space<vmem>>, %arg3: memref<1x512xf32, #tpu.memory_space<vmem>>, %arg4: memref<16x512xf32, #tpu.memory_space<vmem>>) attributes {dimension_semantics = [#tpu.dimension_semantics<parallel>], iteration_bounds = array<i64: 1>, scalar_prefetch = 0 : i64, scratch_operands = 0 : i64, tpu.core_type = #tpu.core_type<tc>, window_params = [{transform_indices = @transform_0, window_bounds = array<i64: 16, 128>}, {pipeline_mode = #tpu.pipeline_mode<synchronous>, transform_indices = @transform_1, window_bounds = array<i64: 128, 512>}, {pipeline_mode = #tpu.pipeline_mode<synchronous>, transform_indices = @transform_2, window_bounds = array<i64: 1, 512>}, {transform_indices = @transform_3, window_bounds = array<i64: 16, 512>}]} {
    %c0 = arith.constant 0 : index
    %c0_0 = arith.constant 0 : index
    %0 = vector.load %arg1[%c0, %c0_0] : memref<16x128xf32, #tpu.memory_space<vmem>>, vector<16x128xf32>
    %c0_1 = arith.constant 0 : index
    %c0_2 = arith.constant 0 : index
    %1 = vector.load %arg2[%c0_1, %c0_2] : memref<128x512xf32, #tpu.memory_space<vmem>>, vector<128x512xf32>
    %cst = arith.constant dense<0.000000e+00> : vector<16x512xf32>
    %2 = tpu.matmul %0, %1, %cst {dimension_numbers = #tpu.dot_dimension_numbers<[1], [0], [0], [1], [0, 0, 1, 1], [], []>} : vector<16x128xf32>, vector<128x512xf32>, vector<16x512xf32> -> vector<16x512xf32>
    %c0_3 = arith.constant 0 : index
    %c0_4 = arith.constant 0 : index
    %3 = vector.load %arg3[%c0_3, %c0_4] : memref<1x512xf32, #tpu.memory_space<vmem>>, vector<1x512xf32>
    %4 = vector.broadcast %3 : vector<1x512xf32> to vector<16x512xf32>
    %5 = arith.addf %2, %4 : vector<16x512xf32>
    %c0_5 = arith.constant 0 : index
    %c0_6 = arith.constant 0 : index
    %6 = vector.load %arg4[%c0_5, %c0_6] : memref<16x512xf32, #tpu.memory_space<vmem>>, vector<16x512xf32>
    tpu.vector_store %arg4[%c0_5, %c0_6], %5 {strides = array<i32>} : memref<16x512xf32, #tpu.memory_space<vmem>>, vector<16x512xf32>,
    return
  }
  func.func @transform_0(%arg0: i32) -> (i32, i32) {
    %c0_i32 = arith.constant 0 : i32
    %c0_i32_0 = arith.constant 0 : i32
    return %arg0, %c0_i32 : i32, i32
  }
  func.func @transform_1(%arg0: i32) -> (i32, i32) {
    %c0_i32 = arith.constant 0 : i32
    %c0_i32_0 = arith.constant 0 : i32
    %c0_i32_1 = arith.constant 0 : i32
    return %c0_i32, %c0_i32_0 : i32, i32
  }
  func.func @transform_2(%arg0: i32) -> (i32, i32) {
    %c0_i32 = arith.constant 0 : i32
    %c0_i32_0 = arith.constant 0 : i32
    %c0_i32_1 = arith.constant 0 : i32
    return %c0_i32, %c0_i32_0 : i32, i32
  }
  func.func @transform_3(%arg0: i32) -> (i32, i32) {
    %c0_i32 = arith.constant 0 : i32
    %c0_i32_0 = arith.constant 0 : i32
    return %arg0, %c0_i32 : i32, i32
  }
}

</mosaic_0001>

<llo_original>
// kernel: tpu_custom_call.1
$region0: #{tpu_custom_call.1}
  #allocation0 [shape = 'u32[]', space=smem, size = 0x4, offset = 0x4, fixed_abs, tag = 'smem constant byte address 0x4 - core index']
  #allocation1 [shape = 'u32[144,128]{1,0:T(1,128)}', space=vmem, size = 0x12000, scoped, tag = 'internal scratch']
  %s0 = inlined_call_operand.hbm [shape: f32[16,128], index: 0, kind: input, shape index: {}]
  %s1 = inlined_call_operand.hbm [shape: f32[128,512], index: 1, kind: input, shape index: {}]
  %s2 = inlined_call_operand.vmem [shape: f32[1,512], index: 2, kind: input, shape index: {}]
  %s3 = inlined_call_operand.hbm [shape: f32[16,512], index: 3, kind: output, shape index: {}]
  %s4 = sld [smem:[#allocation0]]
  $region30: #{tpu_custom_call.1} parent=0
    _
  %s6 = ssub.s32 1, %s4
  %s7 = scalar_select 0, %s6, %s4
  $region1: #{tpu_custom_call.1} parent=0
    #allocation2 [shape = 'u8[8192]{0}', space=vmem, size = 0x2000, scoped, tag = 'input window, operand 0, single buffered']
    #allocation3 [shape = 's32[1]{0}', space=sflag, size = 0x4, scoped, tag = 'scoped memory for tpu_custom_call.1']
    #allocation4 [shape = 's32[1]{0}', space=sflag, size = 0x4, scoped, tag = 'scoped memory for tpu_custom_call.1']
    #allocation5 [shape = 'u8[262144]{0}', space=vmem, size = 0x40000, scoped, tag = 'input window, operand 1, single buffered']
    #allocation6 [shape = 's32[1]{0}', space=sflag, size = 0x4, scoped, tag = 'scoped memory for tpu_custom_call.1']
    #allocation7 [shape = 'u8[32768]{0}', space=vmem, size = 0x8000, scoped, tag = 'output window, operand 0, single buffered']
    %8 = vsyncpa [#allocation3], 0
    %9 = vsyncpa [#allocation6], 0
    %10 = vsyncpa [#allocation4], 0
    // Predicated region
    $region2: #{tpu_custom_call.1} parent=1 // pred_check
      _
    $region3: #{tpu_custom_call.1} parent=1 // pred_check_branch
      %12 = sbr.rel (0) target = $region5
    $region4: #{tpu_custom_call.1} parent=1 // pred_region
      %s14 = ssub.s32 256, 256
      %15 = vsyncadd [#allocation3], %s14
      %s16 = sshll.u32 [#allocation2], 4
      %s17 = int_to_ptr.vmem [resolvable:$true] %s16
      %22 = dma.hbm_to_vmem [thread:$0]  %s0, 256, %s17, [#allocation3], 128, 128, 8
    $region5: #{tpu_custom_call.1} parent=1 // pred_fallthru
      _
    // Predicated region
    $region6: #{tpu_custom_call.1} parent=1 // pred_check
      _
    $region7: #{tpu_custom_call.1} parent=1 // pred_check_branch
      %24 = sbr.rel (0) target = $region9
    $region8: #{tpu_custom_call.1} parent=1 // pred_region
      %s26 = ssub.s32 8192, 8192
      %27 = vsyncadd [#allocation6], %s26
      %s28 = sshll.u32 [#allocation5], 4
      %s29 = int_to_ptr.vmem [resolvable:$true] %s28
      %34 = dma.hbm_to_vmem [thread:$0]  %s1, 8192, %s29, [#allocation6], 512, 512, 32
    $region9: #{tpu_custom_call.1} parent=1 // pred_fallthru
      _
    // Predicated region
    $region10: #{tpu_custom_call.1} parent=1 // pred_check
      _
    $region11: #{tpu_custom_call.1} parent=1 // pred_check_branch
      %36 = sbr.rel (0) target = $region13
    $region12: #{tpu_custom_call.1} parent=1 // pred_region
      _
    $region13: #{tpu_custom_call.1} parent=1 // pred_fallthru
      _
    // Predicated region
    $region14: #{tpu_custom_call.1} parent=1 // pred_check
      _
    $region15: #{tpu_custom_call.1} parent=1 // pred_check_branch
      %38 = sbr.rel (0) target = $region17
    $region16: #{tpu_custom_call.1} parent=1 // pred_region
      %39 = dma.done [#allocation3], 256
    $region17: #{tpu_custom_call.1} parent=1 // pred_fallthru
      _
    // Predicated region
    $region18: #{tpu_custom_call.1} parent=1 // pred_check
      _
    $region19: #{tpu_custom_call.1} parent=1 // pred_check_branch
      %41 = sbr.rel (0) target = $region21
    $region20: #{tpu_custom_call.1} parent=1 // pred_region
      %42 = dma.done [#allocation6], 8192
    $region21: #{tpu_custom_call.1} parent=1 // pred_fallthru
      _
    %v43 = vld [vmem:[#allocation2] sm:$0xff]
    %v44 = vld [vmem:[#allocation2 + $0x8] sm:$0xff]
    %v45 = vld [vmem:[#allocation5] sm:$0xff]
    %v46 = vld [vmem:[#allocation5 + $0x8] sm:$0xff]
    %v47 = vld [vmem:[#allocation5 + $0x10] sm:$0xff]
    %v48 = vld [vmem:[#allocation5 + $0x18] sm:$0xff]
    %v49 = vld [vmem:[#allocation5 + $0x20] sm:$0xff]
    %v50 = vld [vmem:[#allocation5 + $0x28] sm:$0xff]
    %v51 = vld [vmem:[#allocation5 + $0x30] sm:$0xff]
    %v52 = vld [vmem:[#allocation5 + $0x38] sm:$0xff]
    %v53 = vld [vmem:[#allocation5 + $0x40] sm:$0xff]
    %v54 = vld [vmem:[#allocation5 + $0x48] sm:$0xff]
    %v55 = vld [vmem:[#allocation5 + $0x50] sm:$0xff]
    %v56 = vld [vmem:[#allocation5 + $0x58] sm:$0xff]
    %v57 = vld [vmem:[#allocation5 + $0x60] sm:$0xff]
    %v58 = vld [vmem:[#allocation5 + $0x68] sm:$0xff]
    %v59 = vld [vmem:[#allocation5 + $0x70] sm:$0xff]
    %v60 = vld [vmem:[#allocation5 + $0x78] sm:$0xff]
    %v61 = vld [vmem:[#allocation5 + $0x80] sm:$0xff]
    %v62 = vld [vmem:[#allocation5 + $0x88] sm:$0xff]
    %v63 = vld [vmem:[#allocation5 + $0x90] sm:$0xff]
    %v64 = vld [vmem:[#allocation5 + $0x98] sm:$0xff]
    %v65 = vld [vmem:[#allocation5 + $0xa0] sm:$0xff]
    %v66 = vld [vmem:[#allocation5 + $0xa8] sm:$0xff]
    %v67 = vld [vmem:[#allocation5 + $0xb0] sm:$0xff]
    %v68 = vld [vmem:[#allocation5 + $0xb8] sm:$0xff]
    %v69 = vld [vmem:[#allocation5 + $0xc0] sm:$0xff]
    %v70 = vld [vmem:[#allocation5 + $0xc8] sm:$0xff]
    %v71 = vld [vmem:[#allocation5 + $0xd0] sm:$0xff]
    %v72 = vld [vmem:[#allocation5 + $0xd8] sm:$0xff]
    %v73 = vld [vmem:[#allocation5 + $0xe0] sm:$0xff]
    %v74 = vld [vmem:[#allocation5 + $0xe8] sm:$0xff]
    %v75 = vld [vmem:[#allocation5 + $0xf0] sm:$0xff]
    %v76 = vld [vmem:[#allocation5 + $0xf8] sm:$0xff]
    %v77 = vld [vmem:[#allocation5 + $0x100] sm:$0xff]
    %v78 = vld [vmem:[#allocation5 + $0x108] sm:$0xff]
    %v79 = vld [vmem:[#allocation5 + $0x110] sm:$0xff]
    %v80 = vld [vmem:[#allocation5 + $0x118] sm:$0xff]
    %v81 = vld [vmem:[#allocation5 + $0x120] sm:$0xff]
    %v82 = vld [vmem:[#allocation5 + $0x128] sm:$0xff]
    %v83 = vld [vmem:[#allocation5 + $0x130] sm:$0xff]
    %v84 = vld [vmem:[#allocation5 + $0x138] sm:$0xff]
    %v85 = vld [vmem:[#allocation5 + $0x140] sm:$0xff]
    %v86 = vld [vmem:[#allocation5 + $0x148] sm:$0xff]
    %v87 = vld [vmem:[#allocation5 + $0x150] sm:$0xff]
    %v88 = vld [vmem:[#allocation5 + $0x158] sm:$0xff]
    %v89 = vld [vmem:[#allocation5 + $0x160] sm:$0xff]
    %v90 = vld [vmem:[#allocation5 + $0x168] sm:$0xff]
    %v91 = vld [vmem:[#allocation5 + $0x170] sm:$0xff]
    %v92 = vld [vmem:[#allocation5 + $0x178] sm:$0xff]
    %v93 = vld [vmem:[#allocation5 + $0x180] sm:$0xff]
    %v94 = vld [vmem:[#allocation5 + $0x188] sm:$0xff]
    %v95 = vld [vmem:[#allocation5 + $0x190] sm:$0xff]
    %v96 = vld [vmem:[#allocation5 + $0x198] sm:$0xff]
    %v97 = vld [vmem:[#allocation5 + $0x1a0] sm:$0xff]
    %v98 = vld [vmem:[#allocation5 + $0x1a8] sm:$0xff]
    %v99 = vld [vmem:[#allocation5 + $0x1b0] sm:$0xff]
    %v100 = vld [vmem:[#allocation5 + $0x1b8] sm:$0xff]
    %v101 = vld [vmem:[#allocation5 + $0x1c0] sm:$0xff]
    %v102 = vld [vmem:[#allocation5 + $0x1c8] sm:$0xff]
    %v103 = vld [vmem:[#allocation5 + $0x1d0] sm:$0xff]
    %v104 = vld [vmem:[#allocation5 + $0x1d8] sm:$0xff]
    %v105 = vld [vmem:[#allocation5 + $0x1e0] sm:$0xff]
    %v106 = vld [vmem:[#allocation5 + $0x1e8] sm:$0xff]
    %v107 = vld [vmem:[#allocation5 + $0x1f0] sm:$0xff]
    %v108 = vld [vmem:[#allocation5 + $0x1f8] sm:$0xff]
    %v109 = vld [vmem:[%s2] sm:$0xf]
    %v111 = vlaneseq
    %v112 = vshrl.u32 %v111, 7
    %v113 = vsub.s32 0, %v112
    %v114 = vrot.slane %v109, %v113
    %v115 = vlaneseq
    %v116 = vshrl.u32 %v115, 7
    %v117 = vsub.s32 1, %v116
    %v118 = vrot.slane %v109, %v117
    %v119 = vlaneseq
    %v120 = vshrl.u32 %v119, 7
    %v121 = vsub.s32 2, %v120
    %v122 = vrot.slane %v109, %v121
    %v123 = vlaneseq
    %v124 = vshrl.u32 %v123, 7
    %v125 = vsub.s32 3, %v124
    %v126 = vrot.slane %v109, %v125
    %131 = vmatprep.subr.mxu0 %v46
    %132 = vmatpush1.msra.mxu0 %v45
    %133 = vmatprep.subr.mxu0 %v50
    %134 = vmatpush1.msra.mxu0 %v49
    %135 = vmatprep.subr.mxu0 %v54
    %136 = vmatpush1.msra.mxu0 %v53
    %137 = vmatprep.subr.mxu0 %v58
    %138 = vmatpush1.msra.mxu0 %v57
    %139 = vmatprep.subr.mxu0 %v62
    %140 = vmatpush1.msra.mxu0 %v61
    %141 = vmatprep.subr.mxu0 %v66
    %142 = vmatpush1.msra.mxu0 %v65
    %143 = vmatprep.subr.mxu0 %v70
    %144 = vmatpush1.msra.mxu0 %v69
    %145 = vmatprep.subr.mxu0 %v74
    %146 = vmatpush1.msra.mxu0 %v73
    %147 = vmatprep.subr.mxu0 %v78
    %148 = vmatpush1.msra.mxu0 %v77
    %149 = vmatprep.subr.mxu0 %v82
    %150 = vmatpush1.msra.mxu0 %v81
    %151 = vmatprep.subr.mxu0 %v86
    %152 = vmatpush1.msra.mxu0 %v85
    %153 = vmatprep.subr.mxu0 %v90
    %154 = vmatpush1.msra.mxu0 %v89
    %155 = vmatprep.subr.mxu0 %v94
    %156 = vmatpush1.msra.mxu0 %v93
    %157 = vmatprep.subr.mxu0 %v98
    %158 = vmatpush1.msra.mxu0 %v97
    %159 = vmatprep.subr.mxu0 %v102
    %160 = vmatpush1.msra.mxu0 %v101
    %161 = vmatprep.subr.mxu0 %v106
    %162 = vmatpush1.msra.mxu0 %v105
    %163 = vmatprep.subr.mxu0 0.0
    %164 = vmatpush1.msra.mxu0 0.0
    %165 = vmatprep.subr.mxu0 0.0
    %166 = vmatpush1.msra.mxu0 0.0
    %167 = vmatprep.subr.mxu0 0.0
    %168 = vmatpush1.msra.mxu0 0.0
    %169 = vmatprep.subr.mxu0 0.0
    %170 = vmatpush1.msra.mxu0 0.0
    %171 = vmatprep.subr.mxu0 0.0
    %172 = vmatpush1.msra.mxu0 0.0
    %173 = vmatprep.subr.mxu0 0.0
    %174 = vmatpush1.msra.mxu0 0.0
    %175 = vmatprep.subr.mxu0 0.0
    %176 = vmatpush1.msra.mxu0 0.0
    %177 = vmatprep.subr.mxu0 0.0
    %178 = vmatpush1.msra.mxu0 0.0
    %179 = vmatprep.subr.mxu0 0.0
    %180 = vmatpush1.msra.mxu0 0.0
    %181 = vmatprep.subr.mxu0 0.0
    %182 = vmatpush1.msra.mxu0 0.0
    %183 = vmatprep.subr.mxu0 0.0
    %184 = vmatpush1.msra.mxu0 0.0
    %185 = vmatprep.subr.mxu0 0.0
    %186 = vmatpush1.msra.mxu0 0.0
    %187 = vmatprep.subr.mxu0 0.0
    %188 = vmatpush1.msra.mxu0 0.0
    %189 = vmatprep.subr.mxu0 0.0
    %190 = vmatpush1.msra.mxu0 0.0
    %191 = vmatprep.subr.mxu0 0.0
    %192 = vmatpush1.msra.mxu0 0.0
    %193 = vmatprep.subr.mxu0 0.0
    %194 = vmatpush1.msra.mxu0 0.0
    %195 = vmatprep.mubr.f32.mxu0 0.0
    %196 = vmatmul.mubr.f32.gmra.mrb[0].mxu0 %v43
    %v197 = vpop.f32.mrb[0].mxu0
    %v198 = vadd.f32 %v114, %v197
    %v199 = vpop.f32.mrb[0].mxu0
    %v200 = vadd.f32 %v118, %v199
    %201 = vmatprep.mubr.f32.mxu0 0.0
    %202 = vmatmul.mubr.f32.gmra.mrb[0].mxu0 %v44
    %v203 = vpop.f32.mrb[0].mxu0
    %v204 = vadd.f32 %v114, %v203
    %v205 = vpop.f32.mrb[0].mxu0
    %v206 = vadd.f32 %v118, %v205
    %207 = vdwg.mxu0
    %208 = vmatprep.subr.mxu0 %v48
    %209 = vmatpush1.msra.mxu0 %v47
    %210 = vmatprep.subr.mxu0 %v52
    %211 = vmatpush1.msra.mxu0 %v51
    %212 = vmatprep.subr.mxu0 %v56
    %213 = vmatpush1.msra.mxu0 %v55
    %214 = vmatprep.subr.mxu0 %v60
    %215 = vmatpush1.msra.mxu0 %v59
    %216 = vmatprep.subr.mxu0 %v64
    %217 = vmatpush1.msra.mxu0 %v63
    %218 = vmatprep.subr.mxu0 %v68
    %219 = vmatpush1.msra.mxu0 %v67
    %220 = vmatprep.subr.mxu0 %v72
    %221 = vmatpush1.msra.mxu0 %v71
    %222 = vmatprep.subr.mxu0 %v76
    %223 = vmatpush1.msra.mxu0 %v75
    %224 = vmatprep.subr.mxu0 %v80
    %225 = vmatpush1.msra.mxu0 %v79
    %226 = vmatprep.subr.mxu0 %v84
    %227 = vmatpush1.msra.mxu0 %v83
    %228 = vmatprep.subr.mxu0 %v88
    %229 = vmatpush1.msra.mxu0 %v87
    %230 = vmatprep.subr.mxu0 %v92
    %231 = vmatpush1.msra.mxu0 %v91
    %232 = vmatprep.subr.mxu0 %v96
    %233 = vmatpush1.msra.mxu0 %v95
    %234 = vmatprep.subr.mxu0 %v100
    %235 = vmatpush1.msra.mxu0 %v99
    %236 = vmatprep.subr.mxu0 %v104
    %237 = vmatpush1.msra.mxu0 %v103
    %238 = vmatprep.subr.mxu0 %v108
    %239 = vmatpush1.msra.mxu0 %v107
    %240 = vmatprep.subr.mxu0 0.0
    %241 = vmatpush1.msra.mxu0 0.0
    %242 = vmatprep.subr.mxu0 0.0
    %243 = vmatpush1.msra.mxu0 0.0
    %244 = vmatprep.subr.mxu0 0.0
    %245 = vmatpush1.msra.mxu0 0.0
    %246 = vmatprep.subr.mxu0 0.0
    %247 = vmatpush1.msra.mxu0 0.0
    %248 = vmatprep.subr.mxu0 0.0
    %249 = vmatpush1.msra.mxu0 0.0
    %250 = vmatprep.subr.mxu0 0.0
    %251 = vmatpush1.msra.mxu0 0.0
    %252 = vmatprep.subr.mxu0 0.0
    %253 = vmatpush1.msra.mxu0 0.0
    %254 = vmatprep.subr.mxu0 0.0
    %255 = vmatpush1.msra.mxu0 0.0
    %256 = vmatprep.subr.mxu0 0.0
    %257 = vmatpush1.msra.mxu0 0.0
    %258 = vmatprep.subr.mxu0 0.0
    %259 = vmatpush1.msra.mxu0 0.0
    %260 = vmatprep.subr.mxu0 0.0
    %261 = vmatpush1.msra.mxu0 0.0
    %262 = vmatprep.subr.mxu0 0.0
    %263 = vmatpush1.msra.mxu0 0.0
    %264 = vmatprep.subr.mxu0 0.0
    %265 = vmatpush1.msra.mxu0 0.0
    %266 = vmatprep.subr.mxu0 0.0
    %267 = vmatpush1.msra.mxu0 0.0
    %268 = vmatprep.subr.mxu0 0.0
    %269 = vmatpush1.msra.mxu0 0.0
    %270 = vmatprep.subr.mxu0 0.0
    %271 = vmatpush1.msra.mxu0 0.0
    %272 = vmatprep.mubr.f32.mxu0 0.0
    %273 = vmatmul.mubr.f32.gmra.mrb[0].mxu0 %v43
    %v274 = vpop.f32.mrb[0].mxu0
    %v275 = vadd.f32 %v122, %v274
    %v276 = vpop.f32.mrb[0].mxu0
    %v277 = vadd.f32 %v126, %v276
    %278 = vmatprep.mubr.f32.mxu0 0.0
    %279 = vmatmul.mubr.f32.gmra.mrb[0].mxu0 %v44
    %v280 = vpop.f32.mrb[0].mxu0
    %v281 = vadd.f32 %v122, %v280
    %v282 = vpop.f32.mrb[0].mxu0
    %v283 = vadd.f32 %v126, %v282
    %284 = vdwg.mxu0
    %285 = vst [vmem:[#allocation7] sm:$0xff] %v198
    %286 = vst [vmem:[#allocation7 + $0x8] sm:$0xff] %v200
    %287 = vst [vmem:[#allocation7 + $0x10] sm:$0xff] %v275
    %288 = vst [vmem:[#allocation7 + $0x18] sm:$0xff] %v277
    %289 = vst [vmem:[#allocation7 + $0x20] sm:$0xff] %v204
    %290 = vst [vmem:[#allocation7 + $0x28] sm:$0xff] %v206
    %291 = vst [vmem:[#allocation7 + $0x30] sm:$0xff] %v281
    %292 = vst [vmem:[#allocation7 + $0x38] sm:$0xff] %v283
    // Predicated region
    $region22: #{tpu_custom_call.1} parent=1 // pred_check
      _
    $region23: #{tpu_custom_call.1} parent=1 // pred_check_branch
      %294 = sbr.rel (0) target = $region25
    $region24: #{tpu_custom_call.1} parent=1 // pred_region
      %s296 = ssub.s32 1024, 1024
      %297 = vsyncadd [#allocation4], %s296
      %s298 = sshll.u32 [#allocation7], 4
      %s299 = int_to_ptr.vmem [resolvable:$true] %s298
      %304 = dma.vmem_to_hbm [thread:$0]  %s299, 1024, %s3, [#allocation4], 512, 512, 32
    $region25: #{tpu_custom_call.1} parent=1 // pred_fallthru
      _
    // Predicated region
    $region26: #{tpu_custom_call.1} parent=1 // pred_check
      _
    $region27: #{tpu_custom_call.1} parent=1 // pred_check_branch
      %306 = sbr.rel (0) target = $region29
    $region28: #{tpu_custom_call.1} parent=1 // pred_region
      %307 = dma.done [#allocation4], 1024
    $region29: #{tpu_custom_call.1} parent=1 // pred_fallthru
      _
    %308 = vsyncpa [#allocation3], 1
    %309 = vsyncpa [#allocation6], 1
    %310 = vsyncpa [#allocation4], 1

</llo_original>
